<compile_context>
chip_gen: v7x
topology: tpu7x:2x2x1
jax: 0.10.0
libtpu: 0.0.40
codegen_flags: <defaults>
</compile_context>

<pallas_src>
import jax
import jax.numpy as jnp
from jax.experimental import pallas as pl
from jax.experimental.pallas import tpu as pltpu

LANE = 128      # lane width of a TPU vreg (last dim)
SUBLANE = 8     # sublane count of a TPU vreg (second-to-last dim)


# ---------------------------------------------------------------------------
# helpers
# ---------------------------------------------------------------------------
def _round_up(x, m):
    return (x + m - 1) // m * m


def _pad2(m, rows, cols):
    """Zero-pad a 2-D matrix to (rows, cols), f32."""
    m = jnp.asarray(m, jnp.float32)
    out = jnp.zeros((rows, cols), jnp.float32)
    return out.at[: m.shape[0], : m.shape[1]].set(m)


def _vmem_capacity_bytes():
    """Per-core VMEM capacity; conservative v7x default if the query fails."""
    try:
        cap = int(pltpu.get_tpu_info().vmem_capacity_bytes)
        if cap > 0:
            return cap
    except Exception:
        pass
    return 64 * 1024 * 1024


def _vmem_limit(need_bytes):
    cap = _vmem_capacity_bytes()
    return int(min(cap * 9 // 10, max(32 * 1024 * 1024, 2 * int(need_bytes))))


def _pick_row_tile(rows, lane_widths, itemsize, weight_bytes):
    """Row tile for the row-parallel kernels (gated fusion / GRU step).

    Budgeted so (double-buffered row tiles) + (double-buffered resident weights)
    fit comfortably in VMEM even on v7x (64 MiB / TC), while keeping >= 2 grid
    steps whenever possible so the pipeline overlaps DMA with compute and both
    v7x TensorCores get work.
    """
    target = 512 if itemsize >= 4 else 1024
    budget = min(_vmem_capacity_bytes() // 2, 48 * 1024 * 1024)
    per_row = 2 * sum(lane_widths) * itemsize          # x2: double-buffered tiles
    avail = max(budget - 2 * int(weight_bytes), per_row * SUBLANE)
    tm = min(target, max(avail // per_row, SUBLANE), rows)
    if tm >= rows and rows >= 2 * SUBLANE:
        tm = _round_up(rows // 2, SUBLANE)             # keep >= 2 grid steps
    return max(SUBLANE, (int(tm) // SUBLANE) * SUBLANE)


# ---------------------------------------------------------------------------
# kernels
# ---------------------------------------------------------------------------
def _message_passing_kernel(adj_ref, adjt_ref, x_ref, w_ref, b_ref,
                            fw_ref, bw_ref):
    """Both message-passing directions for one graph in one grid step.

      agg(A) = (A @ x + x) / (rowsum(A) + 1);  out(A) = relu(agg(A) @ W + b)

    bw uses A = adj, fw uses A = adj^T (the transpose is done once in the
    wrapper so the kernel never performs an in-kernel relayout).
    """
    wdt = w_ref.dtype
    x = x_ref[...].astype(jnp.float32)
    w = w_ref[...]                      # already in MXU dtype (no per-step cast)
    b = b_ref[...]                      # (1, Hp) f32

    def one_direction(a):
        deg = jnp.sum(a, axis=1, keepdims=True) + 1.0
        agg = (jnp.dot(a, x, preferred_element_type=jnp.float32) + x) / deg
        y = jnp.dot(agg.astype(wdt), w, preferred_element_type=jnp.float32) + b
        return jnp.maximum(y, 0.0)

    bw_ref[...] = one_direction(adj_ref[...].astype(jnp.float32)).astype(bw_ref.dtype)
    fw_ref[...] = one_direction(adjt_ref[...].astype(jnp.float32)).astype(fw_ref.dtype)


def _gated_fusion_kernel(h_ref, x_ref, wh_ref, wx_ref, whx_ref, b_ref, o_ref):
    """GatedFusion with the 4H lane-axis concat algebraically folded away:

      sigmoid(cat([h, x, h*x, h-x]) @ W^T + b)
        == sigmoid(h @ (Wh+Wd) + x @ (Wx-Wd) + (h*x) @ Whx + b)

    and the blend rewritten as out = h - z * (h - x)  (2 VPU ops, not 4).
    """
    wdt = wh_ref.dtype
    h = h_ref[...].astype(jnp.float32)
    x = x_ref[...].astype(jnp.float32)
    acc = jnp.dot(h.astype(wdt), wh_ref[...], preferred_element_type=jnp.float32)
    acc = acc + jnp.dot(x.astype(wdt), wx_ref[...],
                        preferred_element_type=jnp.float32)
    acc = acc + jnp.dot((h * x).astype(wdt), whx_ref[...],
                        preferred_element_type=jnp.float32)
    z = jax.nn.sigmoid(acc + b_ref[...])
    o_ref[...] = (h - z * (h - x)).astype(o_ref.dtype)


def _gru_step_kernel(h_ref, x_ref, wzh_ref, wzx_ref, wrh_ref, wrx_ref,
                     wth_ref, wtx_ref, o_ref):
    """GRUStep with each concat-linear split into two per-operand matmuls."""
    wdt = wzh_ref.dtype
    h = h_ref[...].astype(jnp.float32)
    x = x_ref[...].astype(jnp.float32)
    hm = h.astype(wdt)
    xm = x.astype(wdt)
    z = jax.nn.sigmoid(
        jnp.dot(hm, wzh_ref[...], preferred_element_type=jnp.float32)
        + jnp.dot(xm, wzx_ref[...], preferred_element_type=jnp.float32))
    r = jax.nn.sigmoid(
        jnp.dot(hm, wrh_ref[...], preferred_element_type=jnp.float32)
        + jnp.dot(xm, wrx_ref[...], preferred_element_type=jnp.float32))
    t = jnp.tanh(
        jnp.dot((r * h).astype(wdt), wth_ref[...],
                preferred_element_type=jnp.float32)
        + jnp.dot(xm, wtx_ref[...], preferred_element_type=jnp.float32))
    o_ref[...] = (h + z * (t - h)).astype(o_ref.dtype)   # == (1-z)*h + z*t


# ---------------------------------------------------------------------------
# pallas_call wrappers (operate on padded activations, prepared weights)
# ---------------------------------------------------------------------------
def _message_passing_pair(adj_p, adjt_p, x_p, w_p, b_p):
    """Both MP directions; grid over the batch axis ("parallel" -> megacore).

    NOTE: the node dimension is kept resident per step; very large graphs would
    need a node-blocked variant of this kernel.
    """
    B, Np, Dp = x_p.shape
    Hp = w_p.shape[1]
    dt = x_p.dtype
    isz = jnp.dtype(dt).itemsize
    wsz = int(w_p.size) * jnp.dtype(w_p.dtype).itemsize
    need = 2 * isz * (2 * Np * Np + Np * Dp + 2 * Np * Hp) + 2 * wsz + 2 * Hp * 4

    def graph_spec(c):
        return pl.BlockSpec((None, Np, c), lambda b: (b, 0, 0))

    fw, bw = pl.pallas_call(
        _message_passing_kernel,
        out_shape=(jax.ShapeDtypeStruct((B, Np, Hp), dt),
                   jax.ShapeDtypeStruct((B, Np, Hp), dt)),
        grid_spec=pltpu.PrefetchScalarGridSpec(
            num_scalar_prefetch=0,
            grid=(B,),
            in_specs=[
                graph_spec(Np),                              # adj
                graph_spec(Np),                              # adj^T
                graph_spec(Dp),                              # x
                pl.BlockSpec((Dp, Hp), lambda b: (0, 0)),    # W (grid-constant)
                pl.BlockSpec((1, Hp), lambda b: (0, 0)),     # bias (grid-constant)
            ],
            out_specs=(graph_spec(Hp), graph_spec(Hp)),
        ),
        compiler_params=pltpu.CompilerParams(
            dimension_semantics=("parallel",),
            vmem_limit_bytes=_vmem_limit(need)),
    )(adj_p, adjt_p, x_p, w_p, b_p)
    return fw, bw


def _gated_fusion(h_p, x_p, wh, wx, whx, b_p):
    B, Np, Hp = h_p.shape
    R = B * Np
    h2 = h_p.reshape(R, Hp)
    x2 = x_p.reshape(R, Hp)
    isz = jnp.dtype(h2.dtype).itemsize
    wbytes = sum(int(w.size) * jnp.dtype(w.dtype).itemsize
                 for w in (wh, wx, whx)) + int(b_p.size) * 4
    tm = _pick_row_tile(R, (Hp, Hp, Hp), isz, wbytes)
    need = 2 * tm * 3 * Hp * isz + 2 * wbytes

    def row(w):
        return pl.BlockSpec((tm, w), lambda i: (i, 0))

    # Constant index_map -> block is not re-fetched; pl.Buffered(1) on these
    # specs could further reclaim the second pipeline buffer for very large H.
    def const(s):
        return pl.BlockSpec(s, lambda i: (0, 0))

    out = pl.pallas_call(
        _gated_fusion_kernel,
        out_shape=jax.ShapeDtypeStruct((R, Hp), h2.dtype),
        grid_spec=pltpu.PrefetchScalarGridSpec(
            num_scalar_prefetch=0,
            grid=(pl.cdiv(R, tm),),
            in_specs=[
                row(Hp), row(Hp),
                const((Hp, Hp)), const((Hp, Hp)), const((Hp, Hp)),
                const((1, Hp)),
            ],
            out_specs=row(Hp),
        ),
        compiler_params=pltpu.CompilerParams(
            dimension_semantics=("parallel",),
            vmem_limit_bytes=_vmem_limit(need)),
    )(h2, x2, wh, wx, whx, b_p)
    return out.reshape(B, Np, Hp)


def _gru_step(h_state_p, inp_p, prep):
    B, Np, Hp = h_state_p.shape
    Dp = inp_p.shape[-1]
    R = B * Np
    h2 = h_state_p.reshape(R, Hp)
    x2 = inp_p.reshape(R, Dp)
    weights = (prep["gz_h"], prep["gz_x"], prep["gr_h"], prep["gr_x"],
               prep["gt_h"], prep["gt_x"])
    isz = jnp.dtype(h2.dtype).itemsize
    wbytes = sum(int(w.size) * jnp.dtype(w.dtype).itemsize for w in weights)
    tm = _pick_row_tile(R, (Hp, Dp, Hp), isz, wbytes)
    need = 2 * tm * (2 * Hp + Dp) * isz + 2 * wbytes

    def row(w):
        return pl.BlockSpec((tm, w), lambda i: (i, 0))

    def const(s):
        return pl.BlockSpec(s, lambda i: (0, 0))

    out = pl.pallas_call(
        _gru_step_kernel,
        out_shape=jax.ShapeDtypeStruct((R, Hp), h2.dtype),
        grid_spec=pltpu.PrefetchScalarGridSpec(
            num_scalar_prefetch=0,
            grid=(pl.cdiv(R, tm),),
            in_specs=[
                row(Hp), row(Dp),
                const((Hp, Hp)), const((Dp, Hp)),
                const((Hp, Hp)), const((Dp, Hp)),
                const((Hp, Hp)), const((Dp, Hp)),
            ],
            out_specs=row(Hp),
        ),
        compiler_params=pltpu.CompilerParams(
            dimension_semantics=("parallel",),
            vmem_limit_bytes=_vmem_limit(need)),
    )(h2, x2, *weights)
    return out.reshape(B, Np, Hp)


# ---------------------------------------------------------------------------
# model
# ---------------------------------------------------------------------------
def _linear_init(key, out_features, in_features, bias=True):
    """torch.nn.Linear default init (uniform +-1/sqrt(fan_in))."""
    bound = 1.0 / (in_features ** 0.5)
    kw, kb = jax.random.split(key)
    w = jax.random.uniform(kw, (out_features, in_features),
                           minval=-bound, maxval=bound, dtype=jnp.float32)
    b = None
    if bias:
        b = jax.random.uniform(kb, (out_features,),
                               minval=-bound, maxval=bound, dtype=jnp.float32)
    return w, b


class GatedGraphNN:
    """Pallas-backed forward pass of the PyTorch GatedGraphNN module."""

    def __init__(self, layers, d_in, d_out, *, key, mxu_dtype=jnp.float32):
        assert layers >= 1
        self.layers = layers
        self.d_in = d_in
        self.d_out = d_out
        self.mxu_dtype = mxu_dtype

        self.params = []          # torch-layout parameters (used by the reference too)
        layer_keys = jax.random.split(key, layers)
        for li in range(layers):
            din = d_in if li == 0 else d_out
            k = jax.random.split(layer_keys[li], 5)
            mp_w, mp_b = _linear_init(k[0], d_out, din, bias=True)
            fz_w, fz_b = _linear_init(k[1], d_out, 4 * d_out, bias=True)
            gz_w, _ = _linear_init(k[2], d_out, d_out + din, bias=False)
            gr_w, _ = _linear_init(k[3], d_out, d_out + din, bias=False)
            gt_w, _ = _linear_init(k[4], d_out, d_out + din, bias=False)
            self.params.append(dict(d_in=din, mp_w=mp_w, mp_b=mp_b,
                                    fz_w=fz_w, fz_b=fz_b,
                                    gz_w=gz_w, gr_w=gr_w, gt_w=gt_w))

        # Kernel-ready parameters: transposed, concat-free (folded / split),
        # zero-padded to 128-lane multiples, cast once to the MXU dtype.
        self._prepared = [self._prepare_layer(p) for p in self.params]

    def _prepare_layer(self, p):
        H = self.d_out
        din = p["d_in"]
        Hp = _round_up(H, LANE)
        Dp = _round_up(din, LANE)
        mdt = self.mxu_dtype

        # MessagePassing: agg @ mp_w^T + mp_b
        mp_wT = _pad2(p["mp_w"].T, Dp, Hp).astype(mdt)
        mp_b = _pad2(p["mp_b"][None, :], 1, Hp)                # bias stays f32

        # GatedFusion fold: cat([h,x,h*x,h-x]) @ W^T
        #   == h @ (Wh+Wd) + x @ (Wx-Wd) + (h*x) @ Whx
        wt = p["fz_w"].T                                       # (4H, H)
        wh, wx, whx, wd = wt[:H], wt[H:2 * H], wt[2 * H:3 * H], wt[3 * H:]
        fz_wh = _pad2(wh + wd, Hp, Hp).astype(mdt)
        fz_wx = _pad2(wx - wd, Hp, Hp).astype(mdt)
        fz_whx = _pad2(whx, Hp, Hp).astype(mdt)
        fz_b = _pad2(p["fz_b"][None, :], 1, Hp)                # bias stays f32

        # GRUStep split: cat([h, x]) @ W^T == h @ W[:, :H]^T + x @ W[:, H:]^T
        def split(w):
            return (_pad2(w[:, :H].T, Hp, Hp).astype(mdt),
                    _pad2(w[:, H:].T, Dp, Hp).astype(mdt))

        gz_h, gz_x = split(p["gz_w"])
        gr_h, gr_x = split(p["gr_w"])
        gt_h, gt_x = split(p["gt_w"])
        return dict(Hp=Hp, Dp=Dp, mp_wT=mp_wT, mp_b=mp_b,
                    fz_wh=fz_wh, fz_wx=fz_wx, fz_whx=fz_whx, fz_b=fz_b,
                    gz_h=gz_h, gz_x=gz_x, gr_h=gr_h, gr_x=gr_x,
                    gt_h=gt_h, gt_x=gt_x)

    def __call__(self, x, adj):
        B, N, din = x.shape
        assert din == self.d_in and adj.shape == (B, N, N)
        x = jnp.asarray(x, jnp.float32)
        adj = jnp.asarray(adj, jnp.float32)

        Np = _round_up(max(N, SUBLANE), SUBLANE)
        Dp0 = self._prepared[0]["Dp"]
        # Zero-pad nodes to a sublane multiple, features to a lane multiple.
        h = jnp.zeros((B, Np, Dp0), jnp.float32).at[:, :N, :din].set(x)
        a = jnp.zeros((B, Np, Np), jnp.float32).at[:, :N, :N].set(adj)
        a_t = jnp.swapaxes(a, 1, 2)        # adj^T once, reused by every layer

        for prep in self._prepared:
            fw, bw = _message_passing_pair(a, a_t, h, prep["mp_wT"], prep["mp_b"])
            agg = _gated_fusion(fw, bw, prep["fz_wh"], prep["fz_wx"],
                                prep["fz_whx"], prep["fz_b"])
            h = _gru_step(agg, h, prep)    # GRUStep(input=h_prev, h_state=agg)
        return h[:, :N, : self.d_out]


# ---------------------------------------------------------------------------
# pure-JAX reference (mirrors the PyTorch module; HIGHEST matmul precision)
# ---------------------------------------------------------------------------
def _ggnn_reference(model, x, adj):
    hp = jax.lax.Precision.HIGHEST

    def linear(v, w, b=None):
        out = jnp.matmul(v, w.T, precision=hp)
        return out if b is None else out + b

    h = jnp.asarray(x, jnp.float32)
    adj = jnp.asarray(adj, jnp.float32)
    for p in model.params:
        def mp(v, a):
            norm = jnp.sum(a, axis=2, keepdims=True) + 1.0
            agg = (jnp.einsum("bij,bjd->bid", a, v, precision=hp) + v) / norm
            return jax.nn.relu(linear(agg, p["mp_w"], p["mp_b"]))

        bw = mp(h, adj)
        fw = mp(h, jnp.swapaxes(adj, 1, 2))

        cat = jnp.concatenate([fw, bw, fw * bw, fw - bw], axis=-1)
        z = jax.nn.sigmoid(linear(cat, p["fz_w"], p["fz_b"]))
        agg_state = (1.0 - z) * fw + z * bw

        cat_hx = jnp.concatenate([agg_state, h], axis=-1)
        zz = jax.nn.sigmoid(linear(cat_hx, p["gz_w"]))
        rr = jax.nn.sigmoid(linear(cat_hx, p["gr_w"]))
        tt = jnp.tanh(linear(jnp.concatenate([rr * agg_state, h], axis=-1),
                             p["gt_w"]))
        h = (1.0 - zz) * agg_state + zz * tt
    return h


# ---------------------------------------------------------------------------
# demo / self-test
# ---------------------------------------------------------------------------
if __name__ == "__main__":
    key = jax.random.PRNGKey(0)
    k_x, k_adj, k_model = jax.random.split(key, 3)

    batch, nodes, d_in, d_out, n_layers = 2, 8, 32, 32, 2
    x = jax.random.normal(k_x, (batch, nodes, d_in), dtype=jnp.float32)
    adj = (jax.random.uniform(k_adj, (batch, nodes, nodes)) < 0.4).astype(jnp.float32)

    # f32 MXU-operand path.
    model_f32 = GatedGraphNN(n_layers, d_in, d_out, key=k_model,
                             mxu_dtype=jnp.float32)
    out_f32 = jax.block_until_ready(model_f32(x, adj))

    ref = _ggnn_reference(model_f32, x, adj)
    assert out_f32.shape == (batch, nodes, d_out)
    assert bool(jnp.all(jnp.isfinite(out_f32)))
    err_f32 = float(jnp.max(jnp.abs(out_f32 - ref)))
    # Bound accounts for MXU matmul pass decomposition and the reordered
    # (folded) accumulation across two stacked layers.
    assert err_f32 < 5e-2, f"f32 path mismatch vs reference: max abs err {err_f32}"

    # bf16 MXU-operand path (perf-review recommendation for v5e/v6e/v7x):
    # element-wise math stays f32, only matmul operands/weights are bf16.
    model_bf16 = GatedGraphNN(n_layers, d_in, d_out, key=k_model,
                              mxu_dtype=jnp.bfloat16)
    out_bf16 = jax.block_until_ready(model_bf16(x, adj))
    err_bf16 = float(jnp.max(jnp.abs(out_bf16 - ref)))
    assert err_bf16 < 1e-1, f"bf16 MXU path mismatch vs reference: max abs err {err_bf16}"

    print("KERNEL_OK")
</pallas_src>

<mosaic_0001>
module attributes {stable_mosaic.version = 11 : i64} {
  func.func @_message_passing_kernel(%arg0: i32, %arg1: memref<1x8x8xf32, #tpu.memory_space<vmem>>, %arg2: memref<1x8x8xf32, #tpu.memory_space<vmem>>, %arg3: memref<1x8x128xf32, #tpu.memory_space<vmem>>, %arg4: memref<128x128xf32, #tpu.memory_space<vmem>>, %arg5: memref<1x128xf32, #tpu.memory_space<vmem>>, %arg6: memref<1x8x128xf32, #tpu.memory_space<vmem>>, %arg7: memref<1x8x128xf32, #tpu.memory_space<vmem>>) attributes {dimension_semantics = [#tpu.dimension_semantics<parallel>], iteration_bounds = array<i64: 2>, scalar_prefetch = 0 : i64, scratch_operands = 0 : i64, tpu.core_type = #tpu.core_type<tc>, window_params = [{transform_indices = @transform_0, window_bounds = array<i64: 1, 8, 8>}, {transform_indices = @transform_1, window_bounds = array<i64: 1, 8, 8>}, {transform_indices = @transform_2, window_bounds = array<i64: 1, 8, 128>}, {pipeline_mode = #tpu.pipeline_mode<synchronous>, transform_indices = @transform_3, window_bounds = array<i64: 128, 128>}, {pipeline_mode = #tpu.pipeline_mode<synchronous>, transform_indices = @transform_4, window_bounds = array<i64: 1, 128>}, {transform_indices = @transform_5, window_bounds = array<i64: 1, 8, 128>}, {transform_indices = @transform_6, window_bounds = array<i64: 1, 8, 128>}]} {
    %c0 = arith.constant 0 : index
    %c0_0 = arith.constant 0 : index
    %c0_1 = arith.constant 0 : index
    %0 = vector.load %arg3[%c0, %c0_0, %c0_1] : memref<1x8x128xf32, #tpu.memory_space<vmem>>, vector<1x8x128xf32>
    %1 = vector.shape_cast %0 : vector<1x8x128xf32> to vector<8x128xf32>
    %c0_2 = arith.constant 0 : index
    %c0_3 = arith.constant 0 : index
    %2 = vector.load %arg4[%c0_2, %c0_3] : memref<128x128xf32, #tpu.memory_space<vmem>>, vector<128x128xf32>
    %c0_4 = arith.constant 0 : index
    %c0_5 = arith.constant 0 : index
    %3 = vector.load %arg5[%c0_4, %c0_5] : memref<1x128xf32, #tpu.memory_space<vmem>>, vector<1x128xf32>
    %c0_6 = arith.constant 0 : index
    %c0_7 = arith.constant 0 : index
    %c0_8 = arith.constant 0 : index
    %4 = vector.load %arg1[%c0_6, %c0_7, %c0_8] : memref<1x8x8xf32, #tpu.memory_space<vmem>>, vector<1x8x8xf32>
    %5 = vector.shape_cast %4 : vector<1x8x8xf32> to vector<8x8xf32>
    %cst = arith.constant dense<0.000000e+00> : vector<8xf32>
    %6 = vector.multi_reduction <add>, %5, %cst [1] : vector<8x8xf32> to vector<8xf32>
    %7 = vector.shape_cast %6 : vector<8xf32> to vector<8x1xf32>
    %cst_9 = arith.constant 1.000000e+00 : f32
    %8 = vector.broadcast %cst_9 : f32 to vector<8x1xf32>
    %9 = arith.addf %7, %8 : vector<8x1xf32>
    %cst_10 = arith.constant dense<0.000000e+00> : vector<8x128xf32>
    %10 = tpu.matmul %5, %1, %cst_10 {dimension_numbers = #tpu.dot_dimension_numbers<[1], [0], [0], [1], [0, 0, 1, 1], [], []>} : vector<8x8xf32>, vector<8x128xf32>, vector<8x128xf32> -> vector<8x128xf32>
    %11 = arith.addf %10, %1 : vector<8x128xf32>
    %12 = vector.broadcast %9 : vector<8x1xf32> to vector<8x128xf32>
    %13 = arith.divf %11, %12 : vector<8x128xf32>
    %cst_11 = arith.constant dense<0.000000e+00> : vector<8x128xf32>
    %14 = tpu.matmul %13, %2, %cst_11 {dimension_numbers = #tpu.dot_dimension_numbers<[1], [0], [0], [1], [0, 0, 1, 1], [], []>} : vector<8x128xf32>, vector<128x128xf32>, vector<8x128xf32> -> vector<8x128xf32>
    %15 = vector.broadcast %3 : vector<1x128xf32> to vector<8x128xf32>
    %16 = arith.addf %14, %15 : vector<8x128xf32>
    %cst_12 = arith.constant 0.000000e+00 : f32
    %17 = vector.broadcast %cst_12 : f32 to vector<8x128xf32>
    %18 = arith.maximumf %16, %17 : vector<8x128xf32>
    %c0_13 = arith.constant 0 : index
    %c0_14 = arith.constant 0 : index
    %c0_15 = arith.constant 0 : index
    %19 = vector.load %arg7[%c0_13, %c0_14, %c0_15] : memref<1x8x128xf32, #tpu.memory_space<vmem>>, vector<1x8x128xf32>
    %20 = vector.shape_cast %19 : vector<1x8x128xf32> to vector<8x128xf32>
    %21 = vector.shape_cast %18 : vector<8x128xf32> to vector<1x8x128xf32>
    tpu.vector_store %arg7[%c0_13, %c0_14, %c0_15], %21 {strides = array<i32>} : memref<1x8x128xf32, #tpu.memory_space<vmem>>, vector<1x8x128xf32>,
    %c0_16 = arith.constant 0 : index
    %c0_17 = arith.constant 0 : index
    %c0_18 = arith.constant 0 : index
    %22 = vector.load %arg2[%c0_16, %c0_17, %c0_18] : memref<1x8x8xf32, #tpu.memory_space<vmem>>, vector<1x8x8xf32>
    %23 = vector.shape_cast %22 : vector<1x8x8xf32> to vector<8x8xf32>
    %cst_19 = arith.constant dense<0.000000e+00> : vector<8xf32>
    %24 = vector.multi_reduction <add>, %23, %cst_19 [1] : vector<8x8xf32> to vector<8xf32>
    %25 = vector.shape_cast %24 : vector<8xf32> to vector<8x1xf32>
    %cst_20 = arith.constant 1.000000e+00 : f32
    %26 = vector.broadcast %cst_20 : f32 to vector<8x1xf32>
    %27 = arith.addf %25, %26 : vector<8x1xf32>
    %cst_21 = arith.constant dense<0.000000e+00> : vector<8x128xf32>
    %28 = tpu.matmul %23, %1, %cst_21 {dimension_numbers = #tpu.dot_dimension_numbers<[1], [0], [0], [1], [0, 0, 1, 1], [], []>} : vector<8x8xf32>, vector<8x128xf32>, vector<8x128xf32> -> vector<8x128xf32>
    %29 = arith.addf %28, %1 : vector<8x128xf32>
    %30 = vector.broadcast %27 : vector<8x1xf32> to vector<8x128xf32>
    %31 = arith.divf %29, %30 : vector<8x128xf32>
    %cst_22 = arith.constant dense<0.000000e+00> : vector<8x128xf32>
    %32 = tpu.matmul %31, %2, %cst_22 {dimension_numbers = #tpu.dot_dimension_numbers<[1], [0], [0], [1], [0, 0, 1, 1], [], []>} : vector<8x128xf32>, vector<128x128xf32>, vector<8x128xf32> -> vector<8x128xf32>
    %33 = vector.broadcast %3 : vector<1x128xf32> to vector<8x128xf32>
    %34 = arith.addf %32, %33 : vector<8x128xf32>
    %cst_23 = arith.constant 0.000000e+00 : f32
    %35 = vector.broadcast %cst_23 : f32 to vector<8x128xf32>
    %36 = arith.maximumf %34, %35 : vector<8x128xf32>
    %c0_24 = arith.constant 0 : index
    %c0_25 = arith.constant 0 : index
    %c0_26 = arith.constant 0 : index
    %37 = vector.load %arg6[%c0_24, %c0_25, %c0_26] : memref<1x8x128xf32, #tpu.memory_space<vmem>>, vector<1x8x128xf32>
    %38 = vector.shape_cast %37 : vector<1x8x128xf32> to vector<8x128xf32>
    %39 = vector.shape_cast %36 : vector<8x128xf32> to vector<1x8x128xf32>
    tpu.vector_store %arg6[%c0_24, %c0_25, %c0_26], %39 {strides = array<i32>} : memref<1x8x128xf32, #tpu.memory_space<vmem>>, vector<1x8x128xf32>,
    return
  }
  func.func @transform_0(%arg0: i32) -> (i32, i32, i32) {
    %c0_i32 = arith.constant 0 : i32
    %c0_i32_0 = arith.constant 0 : i32
    %c0_i32_1 = arith.constant 0 : i32
    return %arg0, %c0_i32, %c0_i32_0 : i32, i32, i32
  }
  func.func @transform_1(%arg0: i32) -> (i32, i32, i32) {
    %c0_i32 = arith.constant 0 : i32
    %c0_i32_0 = arith.constant 0 : i32
    %c0_i32_1 = arith.constant 0 : i32
    return %arg0, %c0_i32, %c0_i32_0 : i32, i32, i32
  }
  func.func @transform_2(%arg0: i32) -> (i32, i32, i32) {
    %c0_i32 = arith.constant 0 : i32
    %c0_i32_0 = arith.constant 0 : i32
    %c0_i32_1 = arith.constant 0 : i32
    return %arg0, %c0_i32, %c0_i32_0 : i32, i32, i32
  }
  func.func @transform_3(%arg0: i32) -> (i32, i32) {
    %c0_i32 = arith.constant 0 : i32
    %c0_i32_0 = arith.constant 0 : i32
    %c0_i32_1 = arith.constant 0 : i32
    return %c0_i32, %c0_i32_0 : i32, i32
  }
  func.func @transform_4(%arg0: i32) -> (i32, i32) {
    %c0_i32 = arith.constant 0 : i32
    %c0_i32_0 = arith.constant 0 : i32
    %c0_i32_1 = arith.constant 0 : i32
    return %c0_i32, %c0_i32_0 : i32, i32
  }
  func.func @transform_5(%arg0: i32) -> (i32, i32, i32) {
    %c0_i32 = arith.constant 0 : i32
    %c0_i32_0 = arith.constant 0 : i32
    %c0_i32_1 = arith.constant 0 : i32
    return %arg0, %c0_i32, %c0_i32_0 : i32, i32, i32
  }
  func.func @transform_6(%arg0: i32) -> (i32, i32, i32) {
    %c0_i32 = arith.constant 0 : i32
    %c0_i32_0 = arith.constant 0 : i32
    %c0_i32_1 = arith.constant 0 : i32
    return %arg0, %c0_i32, %c0_i32_0 : i32, i32, i32
  }
}

</mosaic_0001>

<llo_original>
// kernel: tpu_custom_call.1
$region0: #{tpu_custom_call.1}
  #allocation0 [shape = 'u32[]', space=smem, size = 0x4, offset = 0x4, fixed_abs, tag = 'smem constant byte address 0x4 - core index']
  #allocation1 [shape = 'u32[144,128]{1,0:T(1,128)}', space=vmem, size = 0x12000, scoped, tag = 'internal scratch']
  %s0 = inlined_call_operand.hbm [shape: f32[2,8,8], index: 0, kind: input, shape index: {}]
  %s1 = inlined_call_operand.hbm [shape: f32[2,8,8], index: 1, kind: input, shape index: {}]
  %s2 = inlined_call_operand.hbm [shape: f32[2,8,128], index: 2, kind: input, shape index: {}]
  %s3 = inlined_call_operand.hbm [shape: f32[128,128], index: 3, kind: input, shape index: {}]
  %s4 = inlined_call_operand.vmem [shape: f32[1,128], index: 4, kind: input, shape index: {}]
  %s5 = inlined_call_operand.hbm [shape: f32[2,8,128], index: 5, kind: output, shape index: {0}]
  %s6 = inlined_call_operand.hbm [shape: f32[2,8,128], index: 6, kind: output, shape index: {1}]
  %7 = xla_tuple %s5, %s6
  %s8 = sld [smem:[#allocation0]]
  $region77: #{tpu_custom_call.1} parent=0
    _
  %s10 = ssub.s32 1, %s8
  %s11 = scalar_select 0, %s10, %s8
  $region1: #{tpu_custom_call.1} parent=0
    #allocation2 [shape = 'u8[8192]{0}', space=vmem, size = 0x2000, scoped, tag = 'input window, operand 0']
    #allocation3 [shape = 's32[2]{0}', space=sflag, size = 0x8, scoped, tag = 'scoped memory for tpu_custom_call.1']
    #allocation4 [shape = 's32[2]{0}', space=sflag, size = 0x8, scoped, tag = 'scoped memory for tpu_custom_call.1']
    #allocation5 [shape = 'u8[8192]{0}', space=vmem, size = 0x2000, scoped, tag = 'input window, operand 1']
    #allocation6 [shape = 's32[2]{0}', space=sflag, size = 0x8, scoped, tag = 'scoped memory for tpu_custom_call.1']
    #allocation7 [shape = 'u8[8192]{0}', space=vmem, size = 0x2000, scoped, tag = 'input window, operand 2']
    #allocation8 [shape = 'u8[65536]{0}', space=vmem, size = 0x10000, scoped, tag = 'input window, operand 3, single buffered']
    #allocation9 [shape = 's32[1]{0}', space=sflag, size = 0x4, scoped, tag = 'scoped memory for tpu_custom_call.1']
    #allocation10 [shape = 'u8[8192]{0}', space=vmem, size = 0x2000, scoped, tag = 'output window, operand 0']
    #allocation11 [shape = 'u8[8192]{0}', space=vmem, size = 0x2000, scoped, tag = 'output window, operand 1']
    #allocation12 [shape = 's32[2]{0}', space=sflag, size = 0x8, scoped, tag = 'scoped memory for tpu_custom_call.1']
    %12 = vsyncpa [#allocation3], 0
    %s13 = scalar_lea.sflag [#allocation3], 1
    %14 = vsyncpa %s13, 0
    %15 = vsyncpa [#allocation6], 0
    %s16 = scalar_lea.sflag [#allocation6], 1
    %17 = vsyncpa %s16, 0
    %18 = vsyncpa [#allocation9], 0
    %19 = vsyncpa [#allocation4], 0
    %s20 = scalar_lea.sflag [#allocation4], 1
    %21 = vsyncpa %s20, 0
    %22 = vsyncpa [#allocation12], 0
    %s23 = scalar_lea.sflag [#allocation12], 1
    %24 = vsyncpa %s23, 0
    loop: start=0, step=1, limit=4
    $region2: #{tpu_custom_call.1} parent=1 // loop_pre_header
      _
    $region3: #{tpu_custom_call.1} parent=1 // loop_header
      %s26 = sphi 0, %s30
      %p27 = scmp.ge.s32.totalorder %s26, 4
      %s36 = sphi 0, %s38
      %s39 = sphi 0, %s36
      %s40 = sphi 0, %s39
      %s56 = sphi 0, %s40
      %s62 = sphi 0, %s64
      %s65 = sphi 0, %s62
      %s66 = sphi 0, %s65
      %s82 = sphi 0, %s66
      %s88 = sphi 0, %s90
      %s91 = sphi 0, %s88
      %s92 = sphi 0, %s91
      %s108 = sphi 0, %s92
      %s112 = sphi 0, %s112
      %s114 = sphi 0, %s112
      %s115 = sphi 0, %s114
      %s129 = sphi 0, %s115
      %s133 = sphi 0, %s133
      %s135 = sphi 0, %s133
      %s136 = sphi 0, %s135
      %s150 = sphi 0, %s136
      %s156 = sphi 0, %s158
      %s159 = sphi 0, %s156
      %s160 = sphi 0, %s159
      %s176 = sphi 0, %s160
      %s182 = sphi 0, %s184
      %s185 = sphi 0, %s182
      %s186 = sphi 0, %s185
      %s202 = sphi 0, %s186
    $region4: #{tpu_custom_call.1} parent=1 // loop_header_branch
      %29 = sbr.rel (%p27) target = $region8
    $region5: #{tpu_custom_call.1} parent=1 // loop_body
      %s31 = ssub.s32 %s26, 1
      %s32 = ssub.s32 %s26, 2
      %s33 = sadd.s32 %s26, 1
      %s34 = ssub.s32 %s26, %s33
      %p35 = scmp.eq.s32.totalorder %s34, 0
      %s37 = sadd.s32 %s36, 1
      %s38 = scalar_select %p35, %s36, %s37
      %p41 = pneg %p35
      %p42 = scmp.eq.s32.totalorder %s26, 1
      %p43 = por %p41, %p42
      %p44 = scmp.ne.s32.totalorder %s36, %s39
      %p45 = scmp.eq.s32.totalorder %s26, 0
      %p46 = por %p44, %p45
      %p47 = scmp.ne.s32.totalorder %s36, %s39
      %p48 = scmp.eq.s32.totalorder %s31, 1
      %p49 = por %p47, %p48
      %p50 = scmp.ne.s32.totalorder %s39, %s40
      %p51 = scmp.eq.s32.totalorder %s31, 0
      %p52 = por %p50, %p51
      %p53 = scmp.ne.s32.totalorder %s39, %s40
      %p54 = scmp.eq.s32.totalorder %s32, 1
      %p55 = por %p53, %p54
      %p57 = scmp.ne.s32.totalorder %s40, %s56
      %p58 = scmp.eq.s32.totalorder %s32, 0
      %p59 = por %p57, %p58
      %s60 = ssub.s32 %s26, %s33
      %p61 = scmp.eq.s32.totalorder %s60, 0
      %s63 = sadd.s32 %s62, 1
      %s64 = scalar_select %p61, %s62, %s63
      %p67 = pneg %p61
      %p68 = scmp.eq.s32.totalorder %s26, 1
      %p69 = por %p67, %p68
      %p70 = scmp.ne.s32.totalorder %s62, %s65
      %p71 = scmp.eq.s32.totalorder %s26, 0
      %p72 = por %p70, %p71
      %p73 = scmp.ne.s32.totalorder %s62, %s65
      %p74 = scmp.eq.s32.totalorder %s31, 1
      %p75 = por %p73, %p74
      %p76 = scmp.ne.s32.totalorder %s65, %s66
      %p77 = scmp.eq.s32.totalorder %s31, 0
      %p78 = por %p76, %p77
      %p79 = scmp.ne.s32.totalorder %s65, %s66
      %p80 = scmp.eq.s32.totalorder %s32, 1
      %p81 = por %p79, %p80
      %p83 = scmp.ne.s32.totalorder %s66, %s82
      %p84 = scmp.eq.s32.totalorder %s32, 0
      %p85 = por %p83, %p84
      %s86 = ssub.s32 %s26, %s33
      %p87 = scmp.eq.s32.totalorder %s86, 0
      %s89 = sadd.s32 %s88, 1
      %s90 = scalar_select %p87, %s88, %s89
      %p93 = pneg %p87
      %p94 = scmp.eq.s32.totalorder %s26, 1
      %p95 = por %p93, %p94
      %p96 = scmp.ne.s32.totalorder %s88, %s91
      %p97 = scmp.eq.s32.totalorder %s26, 0
      %p98 = por %p96, %p97
      %p99 = scmp.ne.s32.totalorder %s88, %s91
      %p100 = scmp.eq.s32.totalorder %s31, 1
      %p101 = por %p99, %p100
      %p102 = scmp.ne.s32.totalorder %s91, %s92
      %p103 = scmp.eq.s32.totalorder %s31, 0
      %p104 = por %p102, %p103
      %p105 = scmp.ne.s32.totalorder %s91, %s92
      %p106 = scmp.eq.s32.totalorder %s32, 1
      %p107 = por %p105, %p106
      %p109 = scmp.ne.s32.totalorder %s92, %s108
      %p110 = scmp.eq.s32.totalorder %s32, 0
      %p111 = por %p109, %p110
      %s113 = sadd.s32 %s112, 1
      %p116 = scmp.eq.s32.totalorder %s26, 1
      %p117 = scmp.ne.s32.totalorder %s112, %s114
      %p118 = scmp.eq.s32.totalorder %s26, 0
      %p119 = por %p117, %p118
      %p120 = scmp.ne.s32.totalorder %s112, %s114
      %p121 = scmp.eq.s32.totalorder %s31, 1
      %p122 = por %p120, %p121
      %p123 = scmp.ne.s32.totalorder %s114, %s115
      %p124 = scmp.eq.s32.totalorder %s31, 0
      %p125 = por %p123, %p124
      %p126 = scmp.ne.s32.totalorder %s114, %s115
      %p127 = scmp.eq.s32.totalorder %s32, 1
      %p128 = por %p126, %p127
      %p130 = scmp.ne.s32.totalorder %s115, %s129
      %p131 = scmp.eq.s32.totalorder %s32, 0
      %p132 = por %p130, %p131
      %s134 = sadd.s32 %s133, 1
      %p137 = scmp.eq.s32.totalorder %s26, 1
      %p138 = scmp.ne.s32.totalorder %s133, %s135
      %p139 = scmp.eq.s32.totalorder %s26, 0
      %p140 = por %p138, %p139
      %p141 = scmp.ne.s32.totalorder %s133, %s135
      %p142 = scmp.eq.s32.totalorder %s31, 1
      %p143 = por %p141, %p142
      %p144 = scmp.ne.s32.totalorder %s135, %s136
      %p145 = scmp.eq.s32.totalorder %s31, 0
      %p146 = por %p144, %p145
      %p147 = scmp.ne.s32.totalorder %s135, %s136
      %p148 = scmp.eq.s32.totalorder %s32, 1
      %p149 = por %p147, %p148
      %p151 = scmp.ne.s32.totalorder %s136, %s150
      %p152 = scmp.eq.s32.totalorder %s32, 0
      %p153 = por %p151, %p152
      %s154 = ssub.s32 %s26, %s33
      %p155 = scmp.eq.s32.totalorder %s154, 0
      %s157 = sadd.s32 %s156, 1
      %s158 = scalar_select %p155, %s156, %s157
      %p161 = pneg %p155
      %p162 = scmp.eq.s32.totalorder %s26, 1
      %p163 = por %p161, %p162
      %p164 = scmp.ne.s32.totalorder %s156, %s159
      %p165 = scmp.eq.s32.totalorder %s26, 0
      %p166 = por %p164, %p165
      %p167 = scmp.ne.s32.totalorder %s156, %s159
      %p168 = scmp.eq.s32.totalorder %s31, 1
      %p169 = por %p167, %p168
      %p170 = scmp.ne.s32.totalorder %s159, %s160
      %p171 = scmp.eq.s32.totalorder %s31, 0
      %p172 = por %p170, %p171
      %p173 = scmp.ne.s32.totalorder %s159, %s160
      %p174 = scmp.eq.s32.totalorder %s32, 1
      %p175 = por %p173, %p174
      %p177 = scmp.ne.s32.totalorder %s160, %s176
      %p178 = scmp.eq.s32.totalorder %s32, 0
      %p179 = por %p177, %p178
      %s180 = ssub.s32 %s26, %s33
      %p181 = scmp.eq.s32.totalorder %s180, 0
      %s183 = sadd.s32 %s182, 1
      %s184 = scalar_select %p181, %s182, %s183
      %p187 = pneg %p181
      %p188 = scmp.eq.s32.totalorder %s26, 1
      %p189 = por %p187, %p188
      %p190 = scmp.ne.s32.totalorder %s182, %s185
      %p191 = scmp.eq.s32.totalorder %s26, 0
      %p192 = por %p190, %p191
      %p193 = scmp.ne.s32.totalorder %s182, %s185
      %p194 = scmp.eq.s32.totalorder %s31, 1
      %p195 = por %p193, %p194
      %p196 = scmp.ne.s32.totalorder %s185, %s186
      %p197 = scmp.eq.s32.totalorder %s31, 0
      %p198 = por %p196, %p197
      %p199 = scmp.ne.s32.totalorder %s185, %s186
      %p200 = scmp.eq.s32.totalorder %s32, 1
      %p201 = por %p199, %p200
      %p203 = scmp.ne.s32.totalorder %s186, %s202
      %p204 = scmp.eq.s32.totalorder %s32, 0
      %p205 = por %p203, %p204
      %p206 = scmp.le.s32.totalorder 1, %s26
      %p207 = scmp.lt.s32.totalorder %s26, 3
      %p208 = pnand %p206, %p207
      %p209 = pneg %p208
      // Predicated region
      $region9: #{tpu_custom_call.1} parent=5 // pred_check
        _
      $region10: #{tpu_custom_call.1} parent=5 // pred_check_branch
        %211 = sbr.rel (%p208) target = $region12
      $region11: #{tpu_custom_call.1} parent=5 // pred_region
        %s212 = ssub.s32 %s26, 1
        // Predicated region
        $region13: #{tpu_custom_call.1} parent=11 // pred_check
          %p213 = pneg %p125
        $region14: #{tpu_custom_call.1} parent=11 // pred_check_branch
          %215 = sbr.rel (%p213) target = $region16
        $region15: #{tpu_custom_call.1} parent=11 // pred_region
          %s217 = ssub.s32 2048, 2048
          %218 = vsyncadd [#allocation9], %s217
          %s219 = sshll.u32 [#allocation8], 4
          %s220 = int_to_ptr.vmem [resolvable:$true] %s219
          %225 = dma.hbm_to_vmem [thread:$0]  %s3, 2048, %s220, [#allocation9], 128, 128, 8
        $region16: #{tpu_custom_call.1} parent=11 // pred_fallthru
          _
        // Predicated region
        $region17: #{tpu_custom_call.1} parent=11 // pred_check
          %p226 = pneg %p146
        $region18: #{tpu_custom_call.1} parent=11 // pred_check_branch
          %228 = sbr.rel (%p226) target = $region20
        $region19: #{tpu_custom_call.1} parent=11 // pred_region
          _
        $region20: #{tpu_custom_call.1} parent=11 // pred_fallthru
          _
      $region12: #{tpu_custom_call.1} parent=5 // pred_fallthru
        _
      %p229 = scmp.lt.s32.totalorder %s26, 2
      // Predicated region
      $region21: #{tpu_custom_call.1} parent=5 // pred_check
        %p230 = pneg %p229
      $region22: #{tpu_custom_call.1} parent=5 // pred_check_branch
        %232 = sbr.rel (%p230) target = $region24
      $region23: #{tpu_custom_call.1} parent=5 // pred_region
        // Predicated region
        $region25: #{tpu_custom_call.1} parent=23 // pred_check
          %p233 = pneg %p46
        $region26: #{tpu_custom_call.1} parent=23 // pred_check_branch
          %235 = sbr.rel (%p233) target = $region28
        $region27: #{tpu_custom_call.1} parent=23 // pred_region
          %s236 = sand.u32 %s36, 1
          %s237 = scalar_lea.sflag [#allocation3], %s236
          %s238 = sand.u32 %s36, 1
          %s239 = smul.addr %s238, 8
          %s240 = scalar_lea.vmem [#allocation2], %s239
          %s242 = ssub.s32 128, 128
          %243 = vsyncadd %s237, %s242
          %s244 = smul.addr %s26, 128
          %s245 = scalar_lea.hbm %s0, %s244
          %s247 = sshll.u32 %s240, 4
          %s248 = int_to_ptr.vmem [resolvable:$true] %s247
          %250 = dma.hbm_to_vmem [thread:$0]  %s245, 128, %s248, %s237
        $region28: #{tpu_custom_call.1} parent=23 // pred_fallthru
          _
        // Predicated region
        $region29: #{tpu_custom_call.1} parent=23 // pred_check
          %p251 = pneg %p72
        $region30: #{tpu_custom_call.1} parent=23 // pred_check_branch
          %253 = sbr.rel (%p251) target = $region32
        $region31: #{tpu_custom_call.1} parent=23 // pred_region
          %s254 = sand.u32 %s26, 1
          %s255 = scalar_lea.sflag [#allocation6], %s254
          %s256 = sand.u32 %s62, 1
          %s257 = smul.addr %s256, 8
          %s258 = scalar_lea.vmem [#allocation5], %s257
          %s260 = ssub.s32 128, 128
          %261 = vsyncadd %s255, %s260
          %s262 = smul.addr %s26, 128
          %s263 = scalar_lea.hbm %s1, %s262
          %s265 = sshll.u32 %s258, 4
          %s266 = int_to_ptr.vmem [resolvable:$true] %s265
          %268 = dma.hbm_to_vmem [thread:$0]  %s263, 128, %s266, %s255
        $region32: #{tpu_custom_call.1} parent=23 // pred_fallthru
          _
        // Predicated region
        $region33: #{tpu_custom_call.1} parent=23 // pred_check
          %p269 = pneg %p98
        $region34: #{tpu_custom_call.1} parent=23 // pred_check_branch
          %271 = sbr.rel (%p269) target = $region36
        $region35: #{tpu_custom_call.1} parent=23 // pred_region
          %s272 = sand.u32 %s26, 1
          %s273 = scalar_lea.sflag [#allocation6], %s272
          %s274 = sand.u32 %s88, 1
          %s275 = smul.addr %s274, 8
          %s276 = scalar_lea.vmem [#allocation7], %s275
          %s278 = ssub.s32 128, 128
          %279 = vsyncadd %s273, %s278
          %s280 = smul.addr %s26, 128
          %s281 = scalar_lea.hbm %s2, %s280
          %s283 = sshll.u32 %s276, 4
          %s284 = int_to_ptr.vmem [resolvable:$true] %s283
          %286 = dma.hbm_to_vmem [thread:$0]  %s281, 128, %s284, %s273
        $region36: #{tpu_custom_call.1} parent=23 // pred_fallthru
          _
      $region24: #{tpu_custom_call.1} parent=5 // pred_fallthru
        _
      %p287 = scmp.le.s32.totalorder 1, %s26
      %p288 = scmp.lt.s32.totalorder %s26, 3
      %p289 = pnand %p287, %p288
      %p290 = pneg %p289
      // Predicated region
      $region37: #{tpu_custom_call.1} parent=5 // pred_check
        _
      $region38: #{tpu_custom_call.1} parent=5 // pred_check_branch
        %292 = sbr.rel (%p289) target = $region40
      $region39: #{tpu_custom_call.1} parent=5 // pred_region
        %s293 = ssub.s32 %s26, 1
        %s294 = sand.u32 %s39, 1
        %s295 = scalar_lea.sflag [#allocation3], %s294
        %s296 = sand.u32 %s39, 1
        %s297 = smul.addr %s296, 8
        %s298 = scalar_lea.vmem [#allocation2], %s297
        // Predicated region
        $region41: #{tpu_custom_call.1} parent=39 // pred_check
          %p299 = pneg %p52
        $region42: #{tpu_custom_call.1} parent=39 // pred_check_branch
          %301 = sbr.rel (%p299) target = $region44
        $region43: #{tpu_custom_call.1} parent=39 // pred_region
          %302 = dma.done %s295, 128
        $region44: #{tpu_custom_call.1} parent=39 // pred_fallthru
          _
        %s303 = sand.u32 %s31, 1
        %s304 = scalar_lea.sflag [#allocation6], %s303
        %s305 = sand.u32 %s65, 1
        %s306 = smul.addr %s305, 8
        %s307 = scalar_lea.vmem [#allocation5], %s306
        // Predicated region
        $region45: #{tpu_custom_call.1} parent=39 // pred_check
          %p308 = pneg %p78
        $region46: #{tpu_custom_call.1} parent=39 // pred_check_branch
          %310 = sbr.rel (%p308) target = $region48
        $region47: #{tpu_custom_call.1} parent=39 // pred_region
          %311 = dma.done %s304, 128
        $region48: #{tpu_custom_call.1} parent=39 // pred_fallthru
          _
        %s312 = sand.u32 %s31, 1
        %s313 = scalar_lea.sflag [#allocation6], %s312
        %s314 = sand.u32 %s91, 1
        %s315 = smul.addr %s314, 8
        %s316 = scalar_lea.vmem [#allocation7], %s315
        // Predicated region
        $region49: #{tpu_custom_call.1} parent=39 // pred_check
          %p317 = pneg %p104
        $region50: #{tpu_custom_call.1} parent=39 // pred_check_branch
          %319 = sbr.rel (%p317) target = $region52
        $region51: #{tpu_custom_call.1} parent=39 // pred_region
          %320 = dma.done %s313, 128
        $region52: #{tpu_custom_call.1} parent=39 // pred_fallthru
          _
        // Predicated region
        $region53: #{tpu_custom_call.1} parent=39 // pred_check
          %p321 = pneg %p125
        $region54: #{tpu_custom_call.1} parent=39 // pred_check_branch
          %323 = sbr.rel (%p321) target = $region56
        $region55: #{tpu_custom_call.1} parent=39 // pred_region
          %324 = dma.done [#allocation9], 2048
        $region56: #{tpu_custom_call.1} parent=39 // pred_fallthru
          _
        %s325 = sand.u32 %s39, 1
        %s326 = scalar_lea.sflag [#allocation3], %s325
        %s327 = sand.u32 %s39, 1
        %s328 = smul.addr %s327, 8
        %s329 = scalar_lea.vmem [#allocation2], %s328
        %p330 = pneg %p52
        %p331 = pneg %p49
        %s332 = sand.u32 %s31, 1
        %s333 = scalar_lea.sflag [#allocation6], %s332
        %s334 = sand.u32 %s65, 1
        %s335 = smul.addr %s334, 8
        %s336 = scalar_lea.vmem [#allocation5], %s335
        %p337 = pneg %p78
        %p338 = pneg %p75
        %s339 = sand.u32 %s31, 1
        %s340 = scalar_lea.sflag [#allocation6], %s339
        %s341 = sand.u32 %s91, 1
        %s342 = smul.addr %s341, 8
        %s343 = scalar_lea.vmem [#allocation7], %s342
        %p344 = pneg %p104
        %p345 = pneg %p101
        %p346 = pneg %p125
        %p347 = pneg %p122
        %p348 = pneg %p146
        %p349 = pneg %p143
        %p350 = pneg %p172
        %p351 = pneg %p169
        %s352 = sand.u32 %s159, 1
        %s353 = scalar_lea.sflag [#allocation4], %s352
        %s354 = sand.u32 %s159, 1
        %s355 = smul.addr %s354, 8
        %s356 = scalar_lea.vmem [#allocation10], %s355
        %p357 = pneg %p198
        %p358 = pneg %p195
        %s359 = sand.u32 %s185, 1
        %s360 = scalar_lea.sflag [#allocation12], %s359
        %s361 = sand.u32 %s185, 1
        %s362 = smul.addr %s361, 8
        %s363 = scalar_lea.vmem [#allocation11], %s362
        %v364 = vld [vmem:[%s316] sm:$0xff]
        %v365 = vld [vmem:[#allocation8] sm:$0xff]
        %v366 = vld [vmem:[#allocation8 + $0x8] sm:$0xff]
        %v367 = vld [vmem:[#allocation8 + $0x10] sm:$0xff]
        %v368 = vld [vmem:[#allocation8 + $0x18] sm:$0xff]
        %v369 = vld [vmem:[#allocation8 + $0x20] sm:$0xff]
        %v370 = vld [vmem:[#allocation8 + $0x28] sm:$0xff]
        %v371 = vld [vmem:[#allocation8 + $0x30] sm:$0xff]
        %v372 = vld [vmem:[#allocation8 + $0x38] sm:$0xff]
        %v373 = vld [vmem:[#allocation8 + $0x40] sm:$0xff]
        %v374 = vld [vmem:[#allocation8 + $0x48] sm:$0xff]
        %v375 = vld [vmem:[#allocation8 + $0x50] sm:$0xff]
        %v376 = vld [vmem:[#allocation8 + $0x58] sm:$0xff]
        %v377 = vld [vmem:[#allocation8 + $0x60] sm:$0xff]
        %v378 = vld [vmem:[#allocation8 + $0x68] sm:$0xff]
        %v379 = vld [vmem:[#allocation8 + $0x70] sm:$0xff]
        %v380 = vld [vmem:[#allocation8 + $0x78] sm:$0xff]
        %v381 = vld [vmem:[%s4] sm:$0x1]
        %v382 = vld [vmem:[%s298] sm:$0xff]
        %vm383 = vcmask 64512
        %v384 = vsel %vm383, %v382, 0.0
        %385 = vadd.xlane.f32.xlu0 %v384
        %v386 = vpop.xlane.xlu0 %385
        %v387 = vadd.f32 %v386, 1.0
        %v389 = vsel %vm383, %v382, 0
        %391 = vmatprep.subr.mxu0 0.0
        %392 = vmatpush1.msra.mxu0 %v364
        %393 = vmatprep.subr.mxu0 0.0
        %394 = vmatpush1.msra.mxu0 0.0
        %395 = vmatprep.subr.mxu0 0.0
        %396 = vmatpush1.msra.mxu0 0.0
        %397 = vmatprep.subr.mxu0 0.0
        %398 = vmatpush1.msra.mxu0 0.0
        %399 = vmatprep.subr.mxu0 0.0
        %400 = vmatpush1.msra.mxu0 0.0
        %401 = vmatprep.subr.mxu0 0.0
        %402 = vmatpush1.msra.mxu0 0.0
        %403 = vmatprep.subr.mxu0 0.0
        %404 = vmatpush1.msra.mxu0 0.0
        %405 = vmatprep.subr.mxu0 0.0
        %406 = vmatpush1.msra.mxu0 0.0
        %407 = vmatprep.subr.mxu0 0.0
        %408 = vmatpush1.msra.mxu0 0.0
        %409 = vmatprep.subr.mxu0 0.0
        %410 = vmatpush1.msra.mxu0 0.0
        %411 = vmatprep.subr.mxu0 0.0
        %412 = vmatpush1.msra.mxu0 0.0
        %413 = vmatprep.subr.mxu0 0.0
        %414 = vmatpush1.msra.mxu0 0.0
        %415 = vmatprep.subr.mxu0 0.0
        %416 = vmatpush1.msra.mxu0 0.0
        %417 = vmatprep.subr.mxu0 0.0
        %418 = vmatpush1.msra.mxu0 0.0
        %419 = vmatprep.subr.mxu0 0.0
        %420 = vmatpush1.msra.mxu0 0.0
        %421 = vmatprep.subr.mxu0 0.0
        %422 = vmatpush1.msra.mxu0 0.0
        %423 = vmatprep.subr.mxu0 0.0
        %424 = vmatpush1.msra.mxu0 0.0
        %425 = vmatprep.subr.mxu0 0.0
        %426 = vmatpush1.msra.mxu0 0.0
        %427 = vmatprep.subr.mxu0 0.0
        %428 = vmatpush1.msra.mxu0 0.0
        %429 = vmatprep.subr.mxu0 0.0
        %430 = vmatpush1.msra.mxu0 0.0
        %431 = vmatprep.subr.mxu0 0.0
        %432 = vmatpush1.msra.mxu0 0.0
        %433 = vmatprep.subr.mxu0 0.0
        %434 = vmatpush1.msra.mxu0 0.0
        %435 = vmatprep.subr.mxu0 0.0
        %436 = vmatpush1.msra.mxu0 0.0
        %437 = vmatprep.subr.mxu0 0.0
        %438 = vmatpush1.msra.mxu0 0.0
        %439 = vmatprep.subr.mxu0 0.0
        %440 = vmatpush1.msra.mxu0 0.0
        %441 = vmatprep.subr.mxu0 0.0
        %442 = vmatpush1.msra.mxu0 0.0
        %443 = vmatprep.subr.mxu0 0.0
        %444 = vmatpush1.msra.mxu0 0.0
        %445 = vmatprep.subr.mxu0 0.0
        %446 = vmatpush1.msra.mxu0 0.0
        %447 = vmatprep.subr.mxu0 0.0
        %448 = vmatpush1.msra.mxu0 0.0
        %449 = vmatprep.subr.mxu0 0.0
        %450 = vmatpush1.msra.mxu0 0.0
        %451 = vmatprep.subr.mxu0 0.0
        %452 = vmatpush1.msra.mxu0 0.0
        %453 = vmatprep.subr.mxu0 0.0
        %454 = vmatpush1.msra.mxu0 0.0
        %455 = vmatprep.mubr.f32.mxu0 0.0
        %456 = vmatmul.mubr.f32.gmra.mrb[0].mxu0 %v389
        %v457 = vpop.f32.mrb[0].mxu0
        %v458 = vadd.f32 %v364, %v457
        %v459 = vpop.f32.mrb[0].mxu0
        %460 = vdwg.mxu0
        %v461 = vrcp.pop %v387
        %v462 = vmul.f32 %v458, %v461
        %v464 = vlaneseq
        %v465 = vshrl.u32 %v464, 7
        %v466 = vsub.s32 0, %v465
        %v467 = vrot.slane %v381, %v466
        %469 = vmatprep.subr.mxu0 0.0
        %470 = vmatpush1.msra.mxu0 %v365
        %471 = vmatprep.subr.mxu0 0.0
        %472 = vmatpush1.msra.mxu0 %v366
        %473 = vmatprep.subr.mxu0 0.0
        %474 = vmatpush1.msra.mxu0 %v367
        %475 = vmatprep.subr.mxu0 0.0
        %476 = vmatpush1.msra.mxu0 %v368
        %477 = vmatprep.subr.mxu0 0.0
        %478 = vmatpush1.msra.mxu0 %v369
        %479 = vmatprep.subr.mxu0 0.0
        %480 = vmatpush1.msra.mxu0 %v370
        %481 = vmatprep.subr.mxu0 0.0
        %482 = vmatpush1.msra.mxu0 %v371
        %483 = vmatprep.subr.mxu0 0.0
        %484 = vmatpush1.msra.mxu0 %v372
        %485 = vmatprep.subr.mxu0 0.0
        %486 = vmatpush1.msra.mxu0 %v373
        %487 = vmatprep.subr.mxu0 0.0
        %488 = vmatpush1.msra.mxu0 %v374
        %489 = vmatprep.subr.mxu0 0.0
        %490 = vmatpush1.msra.mxu0 %v375
        %491 = vmatprep.subr.mxu0 0.0
        %492 = vmatpush1.msra.mxu0 %v376
        %493 = vmatprep.subr.mxu0 0.0
        %494 = vmatpush1.msra.mxu0 %v377
        %495 = vmatprep.subr.mxu0 0.0
        %496 = vmatpush1.msra.mxu0 %v378
        %497 = vmatprep.subr.mxu0 0.0
        %498 = vmatpush1.msra.mxu0 %v379
        %499 = vmatprep.subr.mxu0 0.0
        %500 = vmatpush1.msra.mxu0 %v380
        %501 = vmatprep.subr.mxu0 0.0
        %502 = vmatpush1.msra.mxu0 0.0
        %503 = vmatprep.subr.mxu0 0.0
        %504 = vmatpush1.msra.mxu0 0.0
        %505 = vmatprep.subr.mxu0 0.0
        %506 = vmatpush1.msra.mxu0 0.0
        %507 = vmatprep.subr.mxu0 0.0
        %508 = vmatpush1.msra.mxu0 0.0
        %509 = vmatprep.subr.mxu0 0.0
        %510 = vmatpush1.msra.mxu0 0.0
        %511 = vmatprep.subr.mxu0 0.0
        %512 = vmatpush1.msra.mxu0 0.0
        %513 = vmatprep.subr.mxu0 0.0
        %514 = vmatpush1.msra.mxu0 0.0
        %515 = vmatprep.subr.mxu0 0.0
        %516 = vmatpush1.msra.mxu0 0.0
        %517 = vmatprep.subr.mxu0 0.0
        %518 = vmatpush1.msra.mxu0 0.0
        %519 = vmatprep.subr.mxu0 0.0
        %520 = vmatpush1.msra.mxu0 0.0
        %521 = vmatprep.subr.mxu0 0.0
        %522 = vmatpush1.msra.mxu0 0.0
        %523 = vmatprep.subr.mxu0 0.0
        %524 = vmatpush1.msra.mxu0 0.0
        %525 = vmatprep.subr.mxu0 0.0
        %526 = vmatpush1.msra.mxu0 0.0
        %527 = vmatprep.subr.mxu0 0.0
        %528 = vmatpush1.msra.mxu0 0.0
        %529 = vmatprep.subr.mxu0 0.0
        %530 = vmatpush1.msra.mxu0 0.0
        %531 = vmatprep.subr.mxu0 0.0
        %532 = vmatpush1.msra.mxu0 0.0
        %533 = vmatprep.mubr.f32.mxu0 0.0
        %534 = vmatmul.mubr.f32.gmra.mrb[0].mxu0 %v462
        %v535 = vpop.f32.mrb[0].mxu0
        %v536 = vadd.f32 %v467, %v535
        %v537 = vpop.f32.mrb[0].mxu0
        %538 = vdwg.mxu0
        %v539 = vmax.f32 %v536, 0.0
        %540 = vst [vmem:[%s363] sm:$0xff] %v539
        %v541 = vld [vmem:[%s307] sm:$0xff]
        %v542 = vsel %vm383, %v541, 0.0
        %543 = vadd.xlane.f32.xlu0 %v542
        %v544 = vpop.xlane.xlu0 %543
        %v545 = vadd.f32 %v544, 1.0
        %v547 = vsel %vm383, %v541, 0
        %549 = vmatprep.subr.mxu0 0.0
        %550 = vmatpush1.msra.mxu0 %v364
        %551 = vmatprep.subr.mxu0 0.0
        %552 = vmatpush1.msra.mxu0 0.0
        %553 = vmatprep.subr.mxu0 0.0
        %554 = vmatpush1.msra.mxu0 0.0
        %555 = vmatprep.subr.mxu0 0.0
        %556 = vmatpush1.msra.mxu0 0.0
        %557 = vmatprep.subr.mxu0 0.0
        %558 = vmatpush1.msra.mxu0 0.0
        %559 = vmatprep.subr.mxu0 0.0
        %560 = vmatpush1.msra.mxu0 0.0
        %561 = vmatprep.subr.mxu0 0.0
        %562 = vmatpush1.msra.mxu0 0.0
        %563 = vmatprep.subr.mxu0 0.0
        %564 = vmatpush1.msra.mxu0 0.0
        %565 = vmatprep.subr.mxu0 0.0
        %566 = vmatpush1.msra.mxu0 0.0
        %567 = vmatprep.subr.mxu0 0.0
        %568 = vmatpush1.msra.mxu0 0.0
        %569 = vmatprep.subr.mxu0 0.0
        %570 = vmatpush1.msra.mxu0 0.0
        %571 = vmatprep.subr.mxu0 0.0
        %572 = vmatpush1.msra.mxu0 0.0
        %573 = vmatprep.subr.mxu0 0.0
        %574 = vmatpush1.msra.mxu0 0.0
        %575 = vmatprep.subr.mxu0 0.0
        %576 = vmatpush1.msra.mxu0 0.0
        %577 = vmatprep.subr.mxu0 0.0
        %578 = vmatpush1.msra.mxu0 0.0
        %579 = vmatprep.subr.mxu0 0.0
        %580 = vmatpush1.msra.mxu0 0.0
        %581 = vmatprep.subr.mxu0 0.0
        %582 = vmatpush1.msra.mxu0 0.0
        %583 = vmatprep.subr.mxu0 0.0
        %584 = vmatpush1.msra.mxu0 0.0
        %585 = vmatprep.subr.mxu0 0.0
        %586 = vmatpush1.msra.mxu0 0.0
        %587 = vmatprep.subr.mxu0 0.0
        %588 = vmatpush1.msra.mxu0 0.0
        %589 = vmatprep.subr.mxu0 0.0
        %590 = vmatpush1.msra.mxu0 0.0
        %591 = vmatprep.subr.mxu0 0.0
        %592 = vmatpush1.msra.mxu0 0.0
        %593 = vmatprep.subr.mxu0 0.0
        %594 = vmatpush1.msra.mxu0 0.0
        %595 = vmatprep.subr.mxu0 0.0
        %596 = vmatpush1.msra.mxu0 0.0
        %597 = vmatprep.subr.mxu0 0.0
        %598 = vmatpush1.msra.mxu0 0.0
        %599 = vmatprep.subr.mxu0 0.0
        %600 = vmatpush1.msra.mxu0 0.0
        %601 = vmatprep.subr.mxu0 0.0
        %602 = vmatpush1.msra.mxu0 0.0
        %603 = vmatprep.subr.mxu0 0.0
        %604 = vmatpush1.msra.mxu0 0.0
        %605 = vmatprep.subr.mxu0 0.0
        %606 = vmatpush1.msra.mxu0 0.0
        %607 = vmatprep.subr.mxu0 0.0
        %608 = vmatpush1.msra.mxu0 0.0
        %609 = vmatprep.subr.mxu0 0.0
        %610 = vmatpush1.msra.mxu0 0.0
        %611 = vmatprep.subr.mxu0 0.0
        %612 = vmatpush1.msra.mxu0 0.0
        %613 = vmatprep.mubr.f32.mxu0 0.0
        %614 = vmatmul.mubr.f32.gmra.mrb[0].mxu0 %v547
        %v615 = vpop.f32.mrb[0].mxu0
        %v616 = vadd.f32 %v364, %v615
        %v617 = vpop.f32.mrb[0].mxu0
        %618 = vdwg.mxu0
        %v619 = vrcp.pop %v545
        %v620 = vmul.f32 %v616, %v619
        %621 = vmatprep.subr.mxu0 0.0
        %622 = vmatpush1.msra.mxu0 %v365
        %623 = vmatprep.subr.mxu0 0.0
        %624 = vmatpush1.msra.mxu0 %v366
        %625 = vmatprep.subr.mxu0 0.0
        %626 = vmatpush1.msra.mxu0 %v367
        %627 = vmatprep.subr.mxu0 0.0
        %628 = vmatpush1.msra.mxu0 %v368
        %629 = vmatprep.subr.mxu0 0.0
        %630 = vmatpush1.msra.mxu0 %v369
        %631 = vmatprep.subr.mxu0 0.0
        %632 = vmatpush1.msra.mxu0 %v370
        %633 = vmatprep.subr.mxu0 0.0
        %634 = vmatpush1.msra.mxu0 %v371
        %635 = vmatprep.subr.mxu0 0.0
        %636 = vmatpush1.msra.mxu0 %v372
        %637 = vmatprep.subr.mxu0 0.0
        %638 = vmatpush1.msra.mxu0 %v373
        %639 = vmatprep.subr.mxu0 0.0
        %640 = vmatpush1.msra.mxu0 %v374
        %641 = vmatprep.subr.mxu0 0.0
        %642 = vmatpush1.msra.mxu0 %v375
        %643 = vmatprep.subr.mxu0 0.0
        %644 = vmatpush1.msra.mxu0 %v376
        %645 = vmatprep.subr.mxu0 0.0
        %646 = vmatpush1.msra.mxu0 %v377
        %647 = vmatprep.subr.mxu0 0.0
        %648 = vmatpush1.msra.mxu0 %v378
        %649 = vmatprep.subr.mxu0 0.0
        %650 = vmatpush1.msra.mxu0 %v379
        %651 = vmatprep.subr.mxu0 0.0
        %652 = vmatpush1.msra.mxu0 %v380
        %653 = vmatprep.subr.mxu0 0.0
        %654 = vmatpush1.msra.mxu0 0.0
        %655 = vmatprep.subr.mxu0 0.0
        %656 = vmatpush1.msra.mxu0 0.0
        %657 = vmatprep.subr.mxu0 0.0
        %658 = vmatpush1.msra.mxu0 0.0
        %659 = vmatprep.subr.mxu0 0.0
        %660 = vmatpush1.msra.mxu0 0.0
        %661 = vmatprep.subr.mxu0 0.0
        %662 = vmatpush1.msra.mxu0 0.0
        %663 = vmatprep.subr.mxu0 0.0
        %664 = vmatpush1.msra.mxu0 0.0
        %665 = vmatprep.subr.mxu0 0.0
        %666 = vmatpush1.msra.mxu0 0.0
        %667 = vmatprep.subr.mxu0 0.0
        %668 = vmatpush1.msra.mxu0 0.0
        %669 = vmatprep.subr.mxu0 0.0
        %670 = vmatpush1.msra.mxu0 0.0
        %671 = vmatprep.subr.mxu0 0.0
        %672 = vmatpush1.msra.mxu0 0.0
        %673 = vmatprep.subr.mxu0 0.0
        %674 = vmatpush1.msra.mxu0 0.0
        %675 = vmatprep.subr.mxu0 0.0
        %676 = vmatpush1.msra.mxu0 0.0
        %677 = vmatprep.subr.mxu0 0.0
        %678 = vmatpush1.msra.mxu0 0.0
        %679 = vmatprep.subr.mxu0 0.0
        %680 = vmatpush1.msra.mxu0 0.0
        %681 = vmatprep.subr.mxu0 0.0
        %682 = vmatpush1.msra.mxu0 0.0
        %683 = vmatprep.subr.mxu0 0.0
        %684 = vmatpush1.msra.mxu0 0.0
        %685 = vmatprep.mubr.f32.mxu0 0.0
        %686 = vmatmul.mubr.f32.gmra.mrb[0].mxu0 %v620
        %v687 = vpop.f32.mrb[0].mxu0
        %v688 = vadd.f32 %v467, %v687
        %v689 = vpop.f32.mrb[0].mxu0
        %690 = vdwg.mxu0
        %v691 = vmax.f32 %v688, 0.0
        %692 = vst [vmem:[%s356] sm:$0xff] %v691
        %s693 = sand.u32 %s159, 1
        %s694 = scalar_lea.sflag [#allocation4], %s693
        %s695 = sand.u32 %s159, 1
        %s696 = smul.addr %s695, 8
        %s697 = scalar_lea.vmem [#allocation10], %s696
        %s698 = sand.u32 %s185, 1
        %s699 = scalar_lea.sflag [#allocation12], %s698
        %s700 = sand.u32 %s185, 1
        %s701 = smul.addr %s700, 8
        %s702 = scalar_lea.vmem [#allocation11], %s701
        // Predicated region
        $region57: #{tpu_custom_call.1} parent=39 // pred_check
          %p703 = pneg %p169
        $region58: #{tpu_custom_call.1} parent=39 // pred_check_branch
          %705 = sbr.rel (%p703) target = $region60
        $region59: #{tpu_custom_call.1} parent=39 // pred_region
          %s707 = ssub.s32 128, 128
          %708 = vsyncadd %s694, %s707
          %s709 = smul.addr %s31, 128
          %s710 = scalar_lea.hbm %s5, %s709
          %s712 = sshll.u32 %s697, 4
          %s713 = int_to_ptr.vmem [resolvable:$true] %s712
          %715 = dma.vmem_to_hbm [thread:$0]  %s713, 128, %s710, %s694
        $region60: #{tpu_custom_call.1} parent=39 // pred_fallthru
          _
        // Predicated region
        $region61: #{tpu_custom_call.1} parent=39 // pred_check
          %p716 = pneg %p195
        $region62: #{tpu_custom_call.1} parent=39 // pred_check_branch
          %718 = sbr.rel (%p716) target = $region64
        $region63: #{tpu_custom_call.1} parent=39 // pred_region
          %s720 = ssub.s32 128, 128
          %721 = vsyncadd %s699, %s720
          %s722 = smul.addr %s31, 128
          %s723 = scalar_lea.hbm %s6, %s722
          %s725 = sshll.u32 %s702, 4
          %s726 = int_to_ptr.vmem [resolvable:$true] %s725
          %728 = dma.vmem_to_hbm [thread:$0]  %s726, 128, %s723, %s699
        $region64: #{tpu_custom_call.1} parent=39 // pred_fallthru
          _
      $region40: #{tpu_custom_call.1} parent=5 // pred_fallthru
        _
      %p729 = scmp.le.s32.totalorder 2, %s26
      // Predicated region
      $region65: #{tpu_custom_call.1} parent=5 // pred_check
        %p730 = pneg %p729
      $region66: #{tpu_custom_call.1} parent=5 // pred_check_branch
        %732 = sbr.rel (%p730) target = $region68
      $region67: #{tpu_custom_call.1} parent=5 // pred_region
        %s733 = ssub.s32 %s26, 2
        // Predicated region
        $region69: #{tpu_custom_call.1} parent=67 // pred_check
          %p734 = pneg %p175
        $region70: #{tpu_custom_call.1} parent=67 // pred_check_branch
          %736 = sbr.rel (%p734) target = $region72
        $region71: #{tpu_custom_call.1} parent=67 // pred_region
          %s737 = sand.u32 %s160, 1
          %s738 = scalar_lea.sflag [#allocation4], %s737
          %s739 = sand.u32 %s160, 1
          %s740 = smul.addr %s739, 8
          %s741 = scalar_lea.vmem [#allocation10], %s740
          %742 = dma.done %s738, 128
        $region72: #{tpu_custom_call.1} parent=67 // pred_fallthru
          _
        // Predicated region
        $region73: #{tpu_custom_call.1} parent=67 // pred_check
          %p743 = pneg %p201
        $region74: #{tpu_custom_call.1} parent=67 // pred_check_branch
          %745 = sbr.rel (%p743) target = $region76
        $region75: #{tpu_custom_call.1} parent=67 // pred_region
          %s746 = sand.u32 %s186, 1
          %s747 = scalar_lea.sflag [#allocation12], %s746
          %s748 = sand.u32 %s186, 1
          %s749 = smul.addr %s748, 8
          %s750 = scalar_lea.vmem [#allocation11], %s749
          %751 = dma.done %s747, 128
        $region76: #{tpu_custom_call.1} parent=67 // pred_fallthru
          _
      $region68: #{tpu_custom_call.1} parent=5 // pred_fallthru
        _
    $region6: #{tpu_custom_call.1} parent=1 // loop_footer
      %s30 = sadd.s32 1, %s26
    $region7: #{tpu_custom_call.1} parent=1 // loop_footer_branch
      %25 = sbr.rel target = $region3
    $region8: #{tpu_custom_call.1} parent=1 // loop_exit
      _
    %752 = vsyncpa [#allocation3], 1
    %s753 = scalar_lea.sflag [#allocation3], 1
    %754 = vsyncpa %s753, 1
    %755 = vsyncpa [#allocation6], 1
    %s756 = scalar_lea.sflag [#allocation6], 1
    %757 = vsyncpa %s756, 1
    %758 = vsyncpa [#allocation9], 1
    %759 = vsyncpa [#allocation4], 1
    %s760 = scalar_lea.sflag [#allocation4], 1
    %761 = vsyncpa %s760, 1
    %762 = vsyncpa [#allocation12], 1
    %s763 = scalar_lea.sflag [#allocation12], 1
    %764 = vsyncpa %s763, 1

</llo_original>
